<compile_context>
chip_gen: v7x
topology: tpu7x:2x2x1
jax: 0.10.0
libtpu: 0.0.40
codegen_flags: <defaults>
</compile_context>

<pallas_src>
import functools
import math

import jax
import jax.numpy as jnp
from jax import lax
from jax.experimental import pallas as pl
from jax.experimental.pallas import tpu as pltpu

_LANES = 128        # vreg lane width
_SUBLANES = 8       # f32 sublanes per vreg
_ROW_ALIGN = 16     # row-block alignment: multiple of 16 keeps bf16 *and* f32 tiling legal
_MAX_TM = 2048      # rows per streaming block: (2048,128) f32 = 1 MiB


def _round_up(a: int, b: int) -> int:
    return -(-a // b) * b


def _cdiv(a: int, b: int) -> int:
    return -(-a // b)


@functools.lru_cache(maxsize=1)
def _num_tensorcores() -> int:
    # Megacore chips (v4, v7x) shard "parallel" grid axes across 2 TensorCores; on single-TC
    # v5e/v6e an extra core axis would only duplicate the tail block's DMA + compute.
    try:
        kind = jax.devices()[0].device_kind.lower()
    except Exception:
        return 1
    return 2 if ("v7" in kind or "v4" in kind) else 1


# --------------------------------------------------------------------------------------------
# shared in-kernel math
# --------------------------------------------------------------------------------------------
def _bce(x_f32, label_val: float, eup_dtype=None):
    """Numerically-stable BCEWithLogits against a constant target, specialized on the label.

    loss = max(x, 0) - x*y + log1p(exp(-|x|))
    """
    neg_abs = -jnp.abs(x_f32)
    if eup_dtype is not None and jnp.dtype(eup_dtype) != jnp.dtype(jnp.float32):
        # Opt-in: run the two transcendentals (exp, log1p) at reduced precision on the EUP.
        softplus = jnp.log1p(jnp.exp(neg_abs.astype(eup_dtype))).astype(jnp.float32)
    else:
        softplus = jnp.log1p(jnp.exp(neg_abs))
    if label_val == 0.0:
        return jnp.maximum(x_f32, 0.0) + softplus
    if label_val == 1.0:
        return jnp.maximum(-x_f32, 0.0) + softplus
    return jnp.maximum(x_f32, 0.0) - x_f32 * label_val + softplus


def _accum_rows(acc_ref, contrib):
    """Fold an (..., rows, 128) f32 block into the (8,128) vector accumulator.

    `rows` is always a static multiple of 8, so the reshape is a tile-aligned relabel (no
    relayout expected) and the fold is plain VPU vreg adds; the single cross-lane/sublane
    reduce happens once, outside the kernel.
    # TODO(synk): if a bundle dump ever shows this reshape materializing an extra VMEM copy,
    # switch to an unrolled per-8-row add chain.
    """
    if contrib.ndim == 3:
        contrib = contrib.sum(axis=0)          # fold the (small) broadcast-group dim first
    acc_ref[...] += contrib.reshape(-1, _SUBLANES, _LANES).sum(axis=0)


# --------------------------------------------------------------------------------------------
# flat streaming kernel (mask same-shaped as x, or no mask)
# --------------------------------------------------------------------------------------------
def _flat_body(x_ref, m_ref, acc_ref, *, label_val, eup_dtype, rows, tiles_per_core, n_blocks):
    c = pl.program_id(0)                 # core shard (parallel)
    i = pl.program_id(1)                 # block within shard (reduction)

    @pl.when(i == 0)
    def _():
        acc_ref[...] = jnp.zeros_like(acc_ref)

    tm = x_ref.shape[0]
    blk = c * tiles_per_core + i         # logical (un-clamped) block index

    loss = _bce(x_ref[...].astype(jnp.float32), label_val, eup_dtype)
    if m_ref is not None:
        loss = loss * m_ref[...].astype(jnp.float32)

    if n_blocks > 1:
        @pl.when(blk < n_blocks - 1)     # fast interior path: no iota / select work
        def _():
            _accum_rows(acc_ref, loss)

    @pl.when(blk >= n_blocks - 1)        # final real block + clamped duplicate blocks
    def _():
        rid = lax.broadcasted_iota(jnp.int32, loss.shape, loss.ndim - 2)
        valid = (blk * tm + rid) < rows  # row-level test: safe up to 2^31 rows (~2.7e11 elems)
        # `where` applied AFTER the mask multiply so garbage (possibly NaN/Inf) in the
        # overhanging edge rows can never leak into the accumulator.
        _accum_rows(acc_ref, jnp.where(valid, loss, 0.0))


def _flat_kernel_plain(x_ref, acc_ref, **kw):
    _flat_body(x_ref, None, acc_ref, **kw)


def _flat_kernel_masked(x_ref, m_ref, acc_ref, **kw):
    _flat_body(x_ref, m_ref, acc_ref, **kw)


def _flat_reduce(x_flat, m_flat, label_val, eup_dtype):
    """Sum of BCE(x)[*mask] over a lane-aligned flat array via a streaming Pallas reduction."""
    rows = x_flat.shape[0] // _LANES
    x2d = x_flat.reshape(rows, _LANES)
    operands = [x2d]
    if m_flat is not None:
        operands.append(m_flat.reshape(rows, _LANES))

    tm = min(_MAX_TM, _round_up(rows, _ROW_ALIGN))
    n_blocks = _cdiv(rows, tm)
    num_cores = _num_tensorcores() if n_blocks > 1 else 1
    tiles_per_core = _cdiv(n_blocks, num_cores)
    grid = (num_cores, tiles_per_core)

    def in_map(c, i):
        # Clamp so a fully out-of-range shard block never issues an OOB DMA; the duplicate
        # data it reads is zeroed by the in-kernel row mask (blk*tm >= rows).
        return (jnp.minimum(c * tiles_per_core + i, n_blocks - 1), 0)

    # TODO(synk): on v7x, consider pipeline_mode=pl.Buffered(3) here if profiling shows
    # exposed DMA at the shorter per-block compute.
    in_specs = [pl.BlockSpec((tm, _LANES), in_map) for _ in operands]
    out_spec = pl.BlockSpec((_SUBLANES, _LANES), lambda c, i: (c, 0))

    kernel = functools.partial(
        _flat_kernel_masked if m_flat is not None else _flat_kernel_plain,
        label_val=label_val, eup_dtype=eup_dtype, rows=rows,
        tiles_per_core=tiles_per_core, n_blocks=n_blocks)

    n_elems = rows * _LANES
    bytes_accessed = sum(int(o.size) * o.dtype.itemsize for o in operands)
    bytes_accessed += num_cores * _SUBLANES * _LANES * 4
    cost = pl.CostEstimate(flops=6 * n_elems, transcendentals=2 * n_elems,
                           bytes_accessed=bytes_accessed)

    partials = pl.pallas_call(
        kernel,
        out_shape=jax.ShapeDtypeStruct((num_cores * _SUBLANES, _LANES), jnp.float32),
        grid_spec=pltpu.PrefetchScalarGridSpec(
            num_scalar_prefetch=0, grid=grid, in_specs=in_specs, out_specs=out_spec),
        compiler_params=pltpu.CompilerParams(
            dimension_semantics=("parallel", "arbitrary")),
        cost_estimate=cost,
    )(*operands)

    return jnp.sum(partials)


# --------------------------------------------------------------------------------------------
# broadcast-mask kernel: x viewed as (A, B, R, 128), mask as (A, R, 128); the B (broadcast)
# axis is expressed in the BlockSpec index_map so the mask is never materialized at x's size.
# --------------------------------------------------------------------------------------------
def _bcast_kernel(x_ref, m_ref, acc_ref, *, label_val, eup_dtype, rows, tr, has_tail, n_r):
    a = pl.program_id(0)
    r = pl.program_id(1)
    b = pl.program_id(2)

    @pl.when((a == 0) & (r == 0) & (b == 0))
    def _():
        acc_ref[...] = jnp.zeros_like(acc_ref)

    loss = _bce(x_ref[...].astype(jnp.float32), label_val, eup_dtype)   # (tb, tr, 128)
    loss = loss * m_ref[...].astype(jnp.float32)                        # broadcast over tb

    if not has_tail:
        _accum_rows(acc_ref, loss)
    else:
        if n_r > 1:
            @pl.when(r < n_r - 1)        # fast interior path
            def _():
                _accum_rows(acc_ref, loss)

        @pl.when(r == n_r - 1)           # overhanging rows of the last row-chunk
        def _():
            rid = lax.broadcasted_iota(jnp.int32, loss.shape, loss.ndim - 2)
            valid = (r * tr + rid) < rows
            _accum_rows(acc_ref, jnp.where(valid, loss, 0.0))


def _bcast_reduce(x, mask, split, label_val, eup_dtype):
    A, B, M = split
    R = M // _LANES
    x3 = x.reshape(A, B, R, _LANES)          # free reshapes (contiguous)
    m3 = mask.reshape(A, R, _LANES)

    tr = min(_MAX_TM, _round_up(R, _ROW_ALIGN))
    n_r = _cdiv(R, tr)
    has_tail = (R % tr) != 0

    # Largest divisor of B such that a block stays <= ~_MAX_TM rows (1-2 MiB f32).
    cap = max(1, _MAX_TM // tr)
    tb = 1
    for d in range(min(B, cap), 0, -1):
        if B % d == 0:
            tb = d
            break
    n_b = B // tb

    grid = (A, n_r, n_b)                     # b innermost: mask block index unchanged there,
    x_spec = pl.BlockSpec((None, tb, tr, _LANES), lambda a, r, b: (a, b, r, 0))
    m_spec = pl.BlockSpec((None, tr, _LANES), lambda a, r, b: (a, r, 0))   # ignores b
    out_spec = pl.BlockSpec((_SUBLANES, _LANES), lambda a, r, b: (0, 0))

    kernel = functools.partial(
        _bcast_kernel, label_val=label_val, eup_dtype=eup_dtype,
        rows=R, tr=tr, has_tail=has_tail, n_r=n_r)

    n_elems = A * B * M
    bytes_accessed = (int(x3.size) * x3.dtype.itemsize
                      + int(m3.size) * m3.dtype.itemsize
                      + _SUBLANES * _LANES * 4)
    cost = pl.CostEstimate(flops=6 * n_elems, transcendentals=2 * n_elems,
                           bytes_accessed=bytes_accessed)

    partials = pl.pallas_call(
        kernel,
        out_shape=jax.ShapeDtypeStruct((_SUBLANES, _LANES), jnp.float32),
        grid_spec=pltpu.PrefetchScalarGridSpec(
            num_scalar_prefetch=0, grid=grid, in_specs=[x_spec, m_spec], out_specs=out_spec),
        compiler_params=pltpu.CompilerParams(
            dimension_semantics=("arbitrary", "arbitrary", "arbitrary")),
        cost_estimate=cost,
    )(x3, m3)

    return jnp.sum(partials)


def _broadcast_split(x_shape, m_shape):
    """Try to view x as (A, B, M) with mask == (A, M) broadcast over the middle B dims."""
    nd = len(x_shape)
    j = nd
    while j > 0 and m_shape[j - 1] == x_shape[j - 1]:
        j -= 1
    k = j
    while k > 0 and m_shape[k - 1] == 1:
        k -= 1
    if any(m_shape[i] != x_shape[i] for i in range(k)):
        return None                                  # non-contiguous broadcast pattern
    A = math.prod(x_shape[:k]) if k > 0 else 1
    B = math.prod(x_shape[k:j]) if j > k else 1
    M = math.prod(x_shape[j:]) if j < nd else 1
    if B <= 1:
        return None
    return int(A), int(B), int(M)


# --------------------------------------------------------------------------------------------
# public wrapper (== MaskedVanillaGANLoss.forward)
# --------------------------------------------------------------------------------------------
def masked_vanilla_gan_loss(x,
                            is_real: bool,
                            mask=None,
                            is_disc: bool = False,
                            *,
                            loss_weight: float = 1.0,
                            real_label: float = 1.0,
                            fake_label: float = 0.0,
                            eup_dtype=None):
    """JAX/Pallas equivalent of MaskedVanillaGANLoss.forward.

    eup_dtype: optional reduced precision (e.g. jnp.bfloat16) for the exp/log1p transcendentals
    (EUP relief on v6e/v7x). Off by default: with it on, results are not f32-reference exact.
    """
    label_val = float(real_label) if is_real else float(fake_label)
    scale = 1.0 if is_disc else float(loss_weight)

    if not jnp.issubdtype(x.dtype, jnp.floating):
        x = x.astype(jnp.float32)

    has_mask = mask is not None
    if has_mask:
        if not jnp.issubdtype(mask.dtype, jnp.floating):
            mask = mask.astype(jnp.float32)          # bool/int masks -> tile-friendly f32
        out_shape = jnp.broadcast_shapes(x.shape, mask.shape)   # torch semantics of loss*mask
        if tuple(out_shape) != tuple(x.shape):
            # TODO(synk): rare case where the mask up-broadcasts the loss tensor; materialize x.
            x = jnp.broadcast_to(x, out_shape)
        if mask.ndim < x.ndim:
            mask = mask.reshape((1,) * (x.ndim - mask.ndim) + tuple(mask.shape))

    n_elems = int(x.size)
    if n_elems == 0:                                 # torch.mean of an empty tensor is NaN
        return jnp.float32(float("nan"))
    denom = jnp.float32(scale / n_elems)

    # ---- broadcast-mask fast path: channel-style broadcast expressed in the index_map ----
    if has_mask and tuple(mask.shape) != tuple(x.shape):
        split = _broadcast_split(tuple(x.shape), tuple(mask.shape))
        if split is not None and split[2] % _LANES == 0:
            return _bcast_reduce(x, mask, split, label_val, eup_dtype) * denom
        # TODO(synk): non-contiguous or lane-unaligned broadcast masks are still materialized.
        mask = jnp.broadcast_to(mask, x.shape)

    # ---- flat streaming path ----
    x_flat = x.reshape(-1)
    m_flat = mask.reshape(-1) if has_mask else None

    aligned = (n_elems // _LANES) * _LANES
    tail_sum = jnp.float32(0.0)
    if aligned != n_elems:
        # <128-element ragged tail reduced with plain jnp (avoids a whole-array pad copy).
        # TODO(synk): the aligned-prefix slice below may still copy; a fully zero-copy path
        # would need ragged last-row handling on a 1-D operand inside the kernel.
        tail = _bce(x_flat[aligned:].astype(jnp.float32), label_val, eup_dtype)
        if has_mask:
            tail = tail * m_flat[aligned:].astype(jnp.float32)
        tail_sum = jnp.sum(tail)
        x_flat = x_flat[:aligned]
        if has_mask:
            m_flat = m_flat[:aligned]

    if aligned == 0:
        return tail_sum * denom

    total = _flat_reduce(x_flat, m_flat, label_val, eup_dtype)
    return (total + tail_sum) * denom


# --------------------------------------------------------------------------------------------
# pure-JAX reference + tests
# --------------------------------------------------------------------------------------------
def _reference(x, is_real, mask, is_disc, loss_weight, real_label, fake_label):
    y = real_label if is_real else fake_label
    xf = x.astype(jnp.float32)
    loss = jnp.maximum(xf, 0.0) - xf * y + jnp.log1p(jnp.exp(-jnp.abs(xf)))
    if mask is not None:
        loss = loss * jnp.broadcast_to(mask, x.shape).astype(jnp.float32)
    loss = jnp.mean(loss)
    return loss if is_disc else loss_weight * loss


if __name__ == "__main__":
    key = jax.random.PRNGKey(0)
    kx, km, kz, kw = jax.random.split(key, 4)
    loss_weight = 0.5

    # 1) generator loss, f32 NCHW logits, (N,1,H,W) broadcast mask -> index_map-broadcast path.
    x = jax.random.normal(kx, (2, 4, 16, 16), dtype=jnp.float32)
    mask = (jax.random.uniform(km, (2, 1, 16, 16)) > 0.5).astype(jnp.float32)
    out = masked_vanilla_gan_loss(x, is_real=True, mask=mask, is_disc=False,
                                  loss_weight=loss_weight)
    out = jax.block_until_ready(out)
    ref = _reference(x, True, mask, False, loss_weight, 1.0, 0.0)
    assert jnp.allclose(out, ref, rtol=1e-5, atol=1e-5), (out, ref)

    # 2) discriminator fake loss (unweighted), no mask -> mask-free flat kernel.
    out2 = masked_vanilla_gan_loss(x, is_real=False, mask=None, is_disc=True,
                                   loss_weight=loss_weight)
    out2 = jax.block_until_ready(out2)
    ref2 = _reference(x, False, None, True, loss_weight, 1.0, 0.0)
    assert jnp.allclose(out2, ref2, rtol=1e-5, atol=1e-5), (out2, ref2)

    # 3) bf16 logits, lane-unaligned numel, broadcast mask with unaligned inner size
    #    -> broadcast_to fallback + flat path + ragged jnp tail.
    x3 = jax.random.normal(kz, (2, 3, 7, 5), dtype=jnp.float32).astype(jnp.bfloat16)
    m3 = (jax.random.uniform(km, (2, 1, 7, 5)) > 0.3).astype(jnp.float32)
    out3 = masked_vanilla_gan_loss(x3, is_real=True, mask=m3, is_disc=False,
                                   loss_weight=loss_weight)
    out3 = jax.block_until_ready(out3)
    ref3 = _reference(x3, True, m3, False, loss_weight, 1.0, 0.0)
    assert jnp.allclose(out3, ref3, rtol=1e-5, atol=1e-4), (out3, ref3)

    # 4) same-shaped mask, multi-block flat path (interior fast path + tail block + accumulate).
    x4 = jax.random.normal(kw, (3, 8, 128, 128), dtype=jnp.float32)
    m4 = (jax.random.uniform(km, (3, 8, 128, 128)) > 0.5).astype(jnp.float32)
    out4 = masked_vanilla_gan_loss(x4, is_real=False, mask=m4, is_disc=False,
                                   loss_weight=loss_weight)
    out4 = jax.block_until_ready(out4)
    ref4 = _reference(x4, False, m4, False, loss_weight, 1.0, 0.0)
    assert jnp.allclose(out4, ref4, rtol=1e-4, atol=1e-5), (out4, ref4)

    # 5) broadcast mask with row-aligned inner size (R multiple of 16) -> no in-kernel tail.
    x5 = jax.random.normal(kx, (2, 4, 32, 64), dtype=jnp.float32)
    m5 = (jax.random.uniform(km, (2, 1, 32, 64)) > 0.5).astype(jnp.float32)
    out5 = masked_vanilla_gan_loss(x5, is_real=True, mask=m5, is_disc=False,
                                   loss_weight=loss_weight)
    out5 = jax.block_until_ready(out5)
    ref5 = _reference(x5, True, m5, False, loss_weight, 1.0, 0.0)
    assert jnp.allclose(out5, ref5, rtol=1e-5, atol=1e-5), (out5, ref5)

    print("KERNEL_OK")
</pallas_src>

<mosaic_0001>
module attributes {stable_mosaic.version = 11 : i64} {
  func.func @_bcast_kernel(%arg0: i32, %arg1: i32, %arg2: i32, %arg3: memref<1x4x16x128xf32, #tpu.memory_space<vmem>>, %arg4: memref<1x16x128xf32, #tpu.memory_space<vmem>>, %arg5: memref<8x128xf32, #tpu.memory_space<vmem>>) attributes {dimension_semantics = [#tpu.dimension_semantics<arbitrary>, #tpu.dimension_semantics<arbitrary>, #tpu.dimension_semantics<arbitrary>], iteration_bounds = array<i64: 2, 1, 1>, scalar_prefetch = 0 : i64, scratch_operands = 0 : i64, tpu.core_type = #tpu.core_type<tc>, window_params = [{transform_indices = @transform_0, window_bounds = array<i64: 1, 4, 16, 128>}, {transform_indices = @transform_1, window_bounds = array<i64: 1, 16, 128>}, {pipeline_mode = #tpu.pipeline_mode<synchronous>, transform_indices = @transform_2, window_bounds = array<i64: 8, 128>}]} {
    %c0_i32 = arith.constant 0 : i32
    %0 = arith.cmpi eq, %arg0, %c0_i32 : i32
    %c0_i32_0 = arith.constant 0 : i32
    %1 = arith.cmpi eq, %arg1, %c0_i32_0 : i32
    %2 = arith.andi %0, %1 : i1
    %c0_i32_1 = arith.constant 0 : i32
    %3 = arith.cmpi eq, %arg2, %c0_i32_1 : i32
    %4 = arith.andi %2, %3 : i1
    %5 = arith.extui %4 : i1 to i32
    %c0_i32_2 = arith.constant 0 : i32
    %6 = arith.cmpi ne, %5, %c0_i32_2 : i32
    scf.if %6 {
      %cst_13 = arith.constant 0.000000e+00 : f32
      %27 = vector.broadcast %cst_13 : f32 to vector<8x128xf32>
      %c0_14 = arith.constant 0 : index
      %c0_15 = arith.constant 0 : index
      %28 = vector.load %arg5[%c0_14, %c0_15] : memref<8x128xf32, #tpu.memory_space<vmem>>, vector<8x128xf32>
      tpu.vector_store %arg5[%c0_14, %c0_15], %27 {strides = array<i32>} : memref<8x128xf32, #tpu.memory_space<vmem>>, vector<8x128xf32>,
    } else {
    }
    %c0 = arith.constant 0 : index
    %c0_3 = arith.constant 0 : index
    %c0_4 = arith.constant 0 : index
    %c0_5 = arith.constant 0 : index
    %7 = vector.load %arg3[%c0, %c0_3, %c0_4, %c0_5] : memref<1x4x16x128xf32, #tpu.memory_space<vmem>>, vector<1x4x16x128xf32>
    %8 = vector.shape_cast %7 : vector<1x4x16x128xf32> to vector<4x16x128xf32>
    %9 = math.absf %8 : vector<4x16x128xf32>
    %cst = arith.constant 0.000000e+00 : f32
    %10 = vector.broadcast %cst : f32 to vector<4x16x128xf32>
    %11 = arith.subf %10, %9 : vector<4x16x128xf32>
    %12 = math.exp %11 : vector<4x16x128xf32>
    %13 = math.log1p %12 : vector<4x16x128xf32>
    %cst_6 = arith.constant 0.000000e+00 : f32
    %14 = vector.broadcast %cst_6 : f32 to vector<4x16x128xf32>
    %15 = arith.subf %14, %8 : vector<4x16x128xf32>
    %cst_7 = arith.constant 0.000000e+00 : f32
    %16 = vector.broadcast %cst_7 : f32 to vector<4x16x128xf32>
    %17 = arith.maximumf %15, %16 : vector<4x16x128xf32>
    %18 = arith.addf %17, %13 : vector<4x16x128xf32>
    %c0_8 = arith.constant 0 : index
    %c0_9 = arith.constant 0 : index
    %c0_10 = arith.constant 0 : index
    %19 = vector.load %arg4[%c0_8, %c0_9, %c0_10] : memref<1x16x128xf32, #tpu.memory_space<vmem>>, vector<1x16x128xf32>
    %20 = vector.shape_cast %19 : vector<1x16x128xf32> to vector<16x128xf32>
    %21 = vector.shape_cast %20 : vector<16x128xf32> to vector<1x16x128xf32>
    %22 = vector.broadcast %21 : vector<1x16x128xf32> to vector<4x16x128xf32>
    %23 = arith.mulf %18, %22 : vector<4x16x128xf32>
    %c0_i32_11 = arith.constant 0 : i32
    %24 = arith.cmpi eq, %arg1, %c0_i32_11 : i32
    %25 = arith.extui %24 : i1 to i32
    %c0_i32_12 = arith.constant 0 : i32
    %26 = arith.cmpi ne, %25, %c0_i32_12 : i32
    scf.if %26 {
      %27 = tpu.iota {dimensions = array<i32: 1>} : vector<4x16x128xi32>
      %c16_i32 = arith.constant 16 : i32
      %28 = arith.muli %arg1, %c16_i32 : i32
      %29 = vector.broadcast %28 : i32 to vector<4x16x128xi32>
      %30 = arith.addi %29, %27 : vector<4x16x128xi32>
      %c2_i32 = arith.constant 2 : i32
      %31 = vector.broadcast %c2_i32 : i32 to vector<4x16x128xi32>
      %32 = arith.cmpi slt, %30, %31 : vector<4x16x128xi32>
      %cst_13 = arith.constant 0.000000e+00 : f32
      %33 = vector.broadcast %cst_13 : f32 to vector<4x16x128xf32>
      %34 = arith.select %32, %23, %33 : vector<4x16x128xi1>, vector<4x16x128xf32>
      %cst_14 = arith.constant dense<0.000000e+00> : vector<16x128xf32>
      %35 = vector.multi_reduction <add>, %34, %cst_14 [0] : vector<4x16x128xf32> to vector<16x128xf32>
      %c0_15 = arith.constant 0 : index
      %c0_16 = arith.constant 0 : index
      %36 = vector.load %arg5[%c0_15, %c0_16] : memref<8x128xf32, #tpu.memory_space<vmem>>, vector<8x128xf32>
      %37 = vector.shape_cast %35 : vector<16x128xf32> to vector<2x8x128xf32>
      %cst_17 = arith.constant dense<0.000000e+00> : vector<8x128xf32>
      %38 = vector.multi_reduction <add>, %37, %cst_17 [0] : vector<2x8x128xf32> to vector<8x128xf32>
      %39 = arith.addf %36, %38 : vector<8x128xf32>
      %c0_18 = arith.constant 0 : index
      %c0_19 = arith.constant 0 : index
      %40 = vector.load %arg5[%c0_18, %c0_19] : memref<8x128xf32, #tpu.memory_space<vmem>>, vector<8x128xf32>
      tpu.vector_store %arg5[%c0_18, %c0_19], %39 {strides = array<i32>} : memref<8x128xf32, #tpu.memory_space<vmem>>, vector<8x128xf32>,
    } else {
    }
    return
  }
  func.func @transform_0(%arg0: i32, %arg1: i32, %arg2: i32) -> (i32, i32, i32, i32) {
    %c0_i32 = arith.constant 0 : i32
    %c0_i32_0 = arith.constant 0 : i32
    return %arg0, %arg2, %arg1, %c0_i32 : i32, i32, i32, i32
  }
  func.func @transform_1(%arg0: i32, %arg1: i32, %arg2: i32) -> (i32, i32, i32) {
    %c0_i32 = arith.constant 0 : i32
    %c0_i32_0 = arith.constant 0 : i32
    return %arg0, %arg1, %c0_i32 : i32, i32, i32
  }
  func.func @transform_2(%arg0: i32, %arg1: i32, %arg2: i32) -> (i32, i32) {
    %c0_i32 = arith.constant 0 : i32
    %c0_i32_0 = arith.constant 0 : i32
    %c0_i32_1 = arith.constant 0 : i32
    return %c0_i32, %c0_i32_0 : i32, i32
  }
}

</mosaic_0001>

<llo_original>
// kernel: tpu_custom_call.1
$region0: #{tpu_custom_call.1}
  #allocation0 [shape = 'u32[]', space=smem, size = 0x4, offset = 0x4, fixed_abs, tag = 'smem constant byte address 0x4 - core index']
  #allocation1 [shape = 'u32[144,128]{1,0:T(1,128)}', space=vmem, size = 0x12000, scoped, tag = 'internal scratch']
  #allocation8 [shape = 's32[]', space=sflag, size = 0x4, offset = 0, fixed_abs, tag = 'sflag constant byte address 0x0 - dummy sync flag']
  %s0 = inlined_call_operand.hbm [shape: f32[2,4,2,128], index: 0, kind: input, shape index: {}]
  %s1 = inlined_call_operand.hbm [shape: f32[2,2,128], index: 1, kind: input, shape index: {}]
  %s2 = inlined_call_operand.hbm [shape: f32[8,128], index: 2, kind: output, shape index: {}]
  %s3 = sld [smem:[#allocation0]]
  $region57: #{tpu_custom_call.1} parent=0
    _
  %s5 = ssub.s32 1, %s3
  %s6 = scalar_select 0, %s5, %s3
  $region1: #{tpu_custom_call.1} parent=0
    #allocation2 [shape = 'u8[65536]{0}', space=vmem, size = 0x10000, scoped, tag = 'input window, operand 0']
    #allocation3 [shape = 's32[2]{0}', space=sflag, size = 0x8, scoped, tag = 'scoped memory for tpu_custom_call.1']
    #allocation4 [shape = 's32[2]{0}', space=sflag, size = 0x8, scoped, tag = 'scoped memory for tpu_custom_call.1']
    #allocation5 [shape = 'u8[16384]{0}', space=vmem, size = 0x4000, scoped, tag = 'input window, operand 1']
    #allocation6 [shape = 's32[2]{0}', space=sflag, size = 0x8, scoped, tag = 'scoped memory for tpu_custom_call.1']
    #allocation7 [shape = 'u8[4096]{0}', space=vmem, size = 0x1000, scoped, tag = 'output window, operand 0, single buffered']
    %7 = vsyncpa [#allocation3], 0
    %s8 = scalar_lea.sflag [#allocation3], 1
    %9 = vsyncpa %s8, 0
    %10 = vsyncpa [#allocation6], 0
    %s11 = scalar_lea.sflag [#allocation6], 1
    %12 = vsyncpa %s11, 0
    %13 = vsyncpa [#allocation4], 0
    loop: start=0, step=1, limit=4
    $region2: #{tpu_custom_call.1} parent=1 // loop_pre_header
      _
    $region3: #{tpu_custom_call.1} parent=1 // loop_header
      %s15 = sphi 0, %s19
      %p16 = scmp.ge.s32.totalorder %s15, 4
      %s22 = sphi 0, %s41
      %s23 = sphi 0, %s37
      %s24 = sphi 0, %s33
      %s25 = sphi 0, %s22
      %s26 = sphi 0, %s23
      %s27 = sphi 0, %s24
      %s28 = sphi 0, %s25
      %s29 = sphi 0, %s26
      %s30 = sphi 0, %s27
      %s48 = sphi 0, %s50
      %s51 = sphi 0, %s48
      %s52 = sphi 0, %s51
      %s68 = sphi 0, %s52
      %s76 = sphi 0, %s78
      %s79 = sphi 0, %s76
      %s80 = sphi 0, %s79
      %s96 = sphi 0, %s80
      %s100 = sphi 0, %s100
      %s102 = sphi 0, %s100
      %s103 = sphi 0, %s102
      %s117 = sphi 0, %s103
    $region4: #{tpu_custom_call.1} parent=1 // loop_header_branch
      %18 = sbr.rel (%p16) target = $region8
    $region5: #{tpu_custom_call.1} parent=1 // loop_body
      %s20 = ssub.s32 %s15, 1
      %s21 = ssub.s32 %s15, 2
      %s31 = sadd.s32 1, %s24
      %p32 = scmp.ge.s32.totalorder %s31, 1
      %s33 = scalar_select %p32, 0, %s31
      %s34 = sadd.s32 1, %s23
      %s35 = scalar_select %p32, %s34, %s23
      %p36 = scmp.ge.s32.totalorder %s35, 1
      %s37 = scalar_select %p36, 0, %s35
      %s38 = sadd.s32 1, %s22
      %s39 = scalar_select %p36, %s38, %s22
      %p40 = scmp.ge.s32.totalorder %s39, 2
      %s41 = scalar_select %p40, 0, %s39
      %s42 = ssub.s32 %s22, %s41
      %s43 = ssub.s32 %s24, %s33
      %s44 = sor.u32 %s42, %s43
      %s45 = ssub.s32 %s23, %s37
      %s46 = sor.u32 %s44, %s45
      %p47 = scmp.eq.s32.totalorder %s46, 0
      %s49 = sadd.s32 %s48, 1
      %s50 = scalar_select %p47, %s48, %s49
      %p53 = pneg %p47
      %p54 = scmp.eq.s32.totalorder %s15, 1
      %p55 = por %p53, %p54
      %p56 = scmp.ne.s32.totalorder %s48, %s51
      %p57 = scmp.eq.s32.totalorder %s15, 0
      %p58 = por %p56, %p57
      %p59 = scmp.ne.s32.totalorder %s48, %s51
      %p60 = scmp.eq.s32.totalorder %s20, 1
      %p61 = por %p59, %p60
      %p62 = scmp.ne.s32.totalorder %s51, %s52
      %p63 = scmp.eq.s32.totalorder %s20, 0
      %p64 = por %p62, %p63
      %p65 = scmp.ne.s32.totalorder %s51, %s52
      %p66 = scmp.eq.s32.totalorder %s21, 1
      %p67 = por %p65, %p66
      %p69 = scmp.ne.s32.totalorder %s52, %s68
      %p70 = scmp.eq.s32.totalorder %s21, 0
      %p71 = por %p69, %p70
      %s72 = ssub.s32 %s22, %s41
      %s73 = ssub.s32 %s23, %s37
      %s74 = sor.u32 %s72, %s73
      %p75 = scmp.eq.s32.totalorder %s74, 0
      %s77 = sadd.s32 %s76, 1
      %s78 = scalar_select %p75, %s76, %s77
      %p81 = pneg %p75
      %p82 = scmp.eq.s32.totalorder %s15, 1
      %p83 = por %p81, %p82
      %p84 = scmp.ne.s32.totalorder %s76, %s79
      %p85 = scmp.eq.s32.totalorder %s15, 0
      %p86 = por %p84, %p85
      %p87 = scmp.ne.s32.totalorder %s76, %s79
      %p88 = scmp.eq.s32.totalorder %s20, 1
      %p89 = por %p87, %p88
      %p90 = scmp.ne.s32.totalorder %s79, %s80
      %p91 = scmp.eq.s32.totalorder %s20, 0
      %p92 = por %p90, %p91
      %p93 = scmp.ne.s32.totalorder %s79, %s80
      %p94 = scmp.eq.s32.totalorder %s21, 1
      %p95 = por %p93, %p94
      %p97 = scmp.ne.s32.totalorder %s80, %s96
      %p98 = scmp.eq.s32.totalorder %s21, 0
      %p99 = por %p97, %p98
      %s101 = sadd.s32 %s100, 1
      %p104 = scmp.eq.s32.totalorder %s15, 1
      %p105 = scmp.ne.s32.totalorder %s100, %s102
      %p106 = scmp.eq.s32.totalorder %s15, 0
      %p107 = por %p105, %p106
      %p108 = scmp.ne.s32.totalorder %s100, %s102
      %p109 = scmp.eq.s32.totalorder %s20, 1
      %p110 = por %p108, %p109
      %p111 = scmp.ne.s32.totalorder %s102, %s103
      %p112 = scmp.eq.s32.totalorder %s20, 0
      %p113 = por %p111, %p112
      %p114 = scmp.ne.s32.totalorder %s102, %s103
      %p115 = scmp.eq.s32.totalorder %s21, 1
      %p116 = por %p114, %p115
      %p118 = scmp.ne.s32.totalorder %s103, %s117
      %p119 = scmp.eq.s32.totalorder %s21, 0
      %p120 = por %p118, %p119
      %p121 = scmp.le.s32.totalorder 1, %s15
      %p122 = scmp.lt.s32.totalorder %s15, 3
      %p123 = pnand %p121, %p122
      %p124 = pneg %p123
      // Predicated region
      $region9: #{tpu_custom_call.1} parent=5 // pred_check
        _
      $region10: #{tpu_custom_call.1} parent=5 // pred_check_branch
        %126 = sbr.rel (%p123) target = $region12
      $region11: #{tpu_custom_call.1} parent=5 // pred_region
        %s127 = ssub.s32 %s15, 1
      $region12: #{tpu_custom_call.1} parent=5 // pred_fallthru
        _
      %p128 = scmp.lt.s32.totalorder %s15, 2
      // Predicated region
      $region13: #{tpu_custom_call.1} parent=5 // pred_check
        %p129 = pneg %p128
      $region14: #{tpu_custom_call.1} parent=5 // pred_check_branch
        %131 = sbr.rel (%p129) target = $region16
      $region15: #{tpu_custom_call.1} parent=5 // pred_region
        // Predicated region
        $region17: #{tpu_custom_call.1} parent=15 // pred_check
          %p132 = pneg %p58
        $region18: #{tpu_custom_call.1} parent=15 // pred_check_branch
          %134 = sbr.rel (%p132) target = $region20
        $region19: #{tpu_custom_call.1} parent=15 // pred_region
          #allocation9 [shape = 'u32[6]{0}', space=smem, size = 0x18, scoped, tag = 'DMA stride descriptor']
          %s135 = sand.u32 %s48, 1
          %s136 = scalar_lea.sflag [#allocation3], %s135
          %s137 = sand.u32 %s48, 1
          %s138 = smul.addr %s137, 64
          %s139 = scalar_lea.vmem [#allocation2], %s138
          %s140 = smul.u32 4, %s24
          %s141 = smul.u32 8, %s23
          %s142 = ssub.s32 1, %s141
          %s143 = smul.u32 128, %s142
          %s145 = ssub.s32 1024, %s143
          %146 = vsyncadd %s136, %s145
          %p147 = scmp.ne.s32.totalorder 0, %s143
          %s148 = sadd.s32 %s141, %s140
          %s149 = smul.addr %s22, 4
          %s150 = sadd.s32 %s148, %s149
          %s151 = smul.addr %s150, 32
          %s152 = scalar_lea.hbm %s0, %s151
          %s153 = smul.u32 2, %s142
          %s154 = smul.u32 %s153, 4
          %s156 = sshll.u32 1, 14
          %s157 = sxor.u32 4294967295, %s156
          %s159 = sld [smem:[#allocation0]]
          %s160 = sadd.s32 2, %s159
          %s162 = sshll.u32 7, 26
          %s163 = sxor.u32 4294967295, %s162
          %s164 = sand.u32 0, %s163
          %s165 = sshll.u32 %s160, 26
          %s166 = sor.u32 %s164, %s165
          %s167 = sshll.u32 %s139, 4
          %s168 = int_to_ptr.vmem [resolvable:$true] %s167
          %s169 = sshll.u32 %s154, 4
          %174 = sst [smem:[#allocation9]] 32
          %s175 = scalar_lea.smem [#allocation9], 1
          %176 = sst [smem:[%s175]] 256
          %s177 = scalar_lea.smem [#allocation9], 2
          %178 = sst [smem:[%s177]] %s142
          %s179 = scalar_lea.smem [#allocation9], 3
          %180 = sst [smem:[%s179]] 32
          %s181 = scalar_lea.smem [#allocation9], 4
          %182 = sst [smem:[%s181]] 32
          %s183 = scalar_lea.smem [#allocation9], 5
          %184 = sst [smem:[%s183]] 2
          %186 = dma.general (%p147), %s152, %s169, %s168, %s136, [#allocation8], [#allocation9], %s166, 0
        $region20: #{tpu_custom_call.1} parent=15 // pred_fallthru
          _
        // Predicated region
        $region21: #{tpu_custom_call.1} parent=15 // pred_check
          %p187 = pneg %p86
        $region22: #{tpu_custom_call.1} parent=15 // pred_check_branch
          %189 = sbr.rel (%p187) target = $region24
        $region23: #{tpu_custom_call.1} parent=15 // pred_region
          %s190 = sand.u32 %s76, 1
          %s191 = scalar_lea.sflag [#allocation6], %s190
          %s192 = sand.u32 %s76, 1
          %s193 = smul.addr %s192, 16
          %s194 = scalar_lea.vmem [#allocation5], %s193
          %s195 = smul.u32 8, %s23
          %s196 = ssub.s32 1, %s195
          %s197 = smul.u32 32, %s196
          %s199 = ssub.s32 256, %s197
          %200 = vsyncadd %s191, %s199
          %p201 = scmp.ne.s32.totalorder 0, %s197
          %s202 = sadd.s32 %s195, %s22
          %s203 = smul.addr %s202, 32
          %s204 = scalar_lea.hbm %s1, %s203
          %s205 = smul.u32 2, %s196
          %s206 = sshll.u32 %s194, 4
          %s207 = int_to_ptr.vmem [resolvable:$true] %s206
          %s208 = sshll.u32 %s205, 4
          %212 = dma.hbm_to_vmem [thread:$0]  (%p201), %s204, %s208, %s207, %s191, 32, 32, 2
        $region24: #{tpu_custom_call.1} parent=15 // pred_fallthru
          _
      $region16: #{tpu_custom_call.1} parent=5 // pred_fallthru
        _
      %p213 = scmp.le.s32.totalorder 1, %s15
      %p214 = scmp.lt.s32.totalorder %s15, 3
      %p215 = pnand %p213, %p214
      %p216 = pneg %p215
      // Predicated region
      $region25: #{tpu_custom_call.1} parent=5 // pred_check
        _
      $region26: #{tpu_custom_call.1} parent=5 // pred_check_branch
        %218 = sbr.rel (%p215) target = $region28
      $region27: #{tpu_custom_call.1} parent=5 // pred_region
        %s219 = ssub.s32 %s15, 1
        %s220 = sand.u32 %s51, 1
        %s221 = scalar_lea.sflag [#allocation3], %s220
        %s222 = sand.u32 %s51, 1
        %s223 = smul.addr %s222, 64
        %s224 = scalar_lea.vmem [#allocation2], %s223
        // Predicated region
        $region29: #{tpu_custom_call.1} parent=27 // pred_check
          %p225 = pneg %p64
        $region30: #{tpu_custom_call.1} parent=27 // pred_check_branch
          %227 = sbr.rel (%p225) target = $region32
        $region31: #{tpu_custom_call.1} parent=27 // pred_region
          %228 = dma.done %s221, 1024
        $region32: #{tpu_custom_call.1} parent=27 // pred_fallthru
          _
        %s229 = sand.u32 %s79, 1
        %s230 = scalar_lea.sflag [#allocation6], %s229
        %s231 = sand.u32 %s79, 1
        %s232 = smul.addr %s231, 16
        %s233 = scalar_lea.vmem [#allocation5], %s232
        // Predicated region
        $region33: #{tpu_custom_call.1} parent=27 // pred_check
          %p234 = pneg %p92
        $region34: #{tpu_custom_call.1} parent=27 // pred_check_branch
          %236 = sbr.rel (%p234) target = $region36
        $region35: #{tpu_custom_call.1} parent=27 // pred_region
          %237 = dma.done %s230, 256
        $region36: #{tpu_custom_call.1} parent=27 // pred_fallthru
          _
        %s238 = sand.u32 %s51, 1
        %s239 = scalar_lea.sflag [#allocation3], %s238
        %s240 = sand.u32 %s51, 1
        %s241 = smul.addr %s240, 64
        %s242 = scalar_lea.vmem [#allocation2], %s241
        %p243 = pneg %p64
        %p244 = pneg %p61
        %s245 = sand.u32 %s79, 1
        %s246 = scalar_lea.sflag [#allocation6], %s245
        %s247 = sand.u32 %s79, 1
        %s248 = smul.addr %s247, 16
        %s249 = scalar_lea.vmem [#allocation5], %s248
        %p250 = pneg %p92
        %p251 = pneg %p89
        %p252 = pneg %p113
        %p253 = pneg %p110
        %s254 = smul.u32 4, %s27
        %s255 = smul.u32 8, %s26
        %s256 = ssub.s32 1, %s255
        %s257 = smul.u32 128, %s256
        %s258 = smul.u32 8, %s26
        %s259 = ssub.s32 1, %s258
        %s260 = smul.u32 32, %s259
        %p261 = scmp.eq.s32.totalorder %s25, 0
        %p262 = scmp.eq.s32.totalorder %s26, 0
        %p263 = pnand %p261, %p262
        %p264 = pneg %p263
        %p265 = scmp.eq.s32.totalorder %s27, 0
        %p266 = pnand %p264, %p265
        %p267 = pneg %p266
        // Predicated region
        $region37: #{tpu_custom_call.1} parent=27 // pred_check
          _
        $region38: #{tpu_custom_call.1} parent=27 // pred_check_branch
          %269 = sbr.rel (%p266) target = $region40
        $region39: #{tpu_custom_call.1} parent=27 // pred_region
          %270 = vst [vmem:[#allocation7] sm:$0xff] 0.0
        $region40: #{tpu_custom_call.1} parent=27 // pred_fallthru
          _
        %v271 = vld [vmem:[%s224] sm:$0xff]
        %v272 = vld [vmem:[%s224 + $0x8] sm:$0xff]
        %v273 = vld [vmem:[%s224 + $0x10] sm:$0xff]
        %v274 = vld [vmem:[%s224 + $0x18] sm:$0xff]
        %v275 = vld [vmem:[%s224 + $0x20] sm:$0xff]
        %v276 = vld [vmem:[%s224 + $0x28] sm:$0xff]
        %v277 = vld [vmem:[%s224 + $0x30] sm:$0xff]
        %v278 = vld [vmem:[%s224 + $0x38] sm:$0xff]
        %v279 = vand.u32 2147483647, %v271
        %v280 = vand.u32 2147483647, %v272
        %v281 = vand.u32 2147483647, %v273
        %v282 = vand.u32 2147483647, %v274
        %v283 = vand.u32 2147483647, %v275
        %v284 = vand.u32 2147483647, %v276
        %v285 = vand.u32 2147483647, %v277
        %v286 = vand.u32 2147483647, %v278
        %v287 = vsub.f32 0.0, %v279
        %v288 = vsub.f32 0.0, %v280
        %v289 = vsub.f32 0.0, %v281
        %v290 = vsub.f32 0.0, %v282
        %v291 = vsub.f32 0.0, %v283
        %v292 = vsub.f32 0.0, %v284
        %v293 = vsub.f32 0.0, %v285
        %v294 = vsub.f32 0.0, %v286
        %v295 = vmul.f32 %v287, 1.442695
        %v296 = vpow.pop %v295
        %v297 = vmul.f32 %v288, 1.442695
        %v298 = vpow.pop %v297
        %v299 = vmul.f32 %v289, 1.442695
        %v300 = vpow.pop %v299
        %v301 = vmul.f32 %v290, 1.442695
        %v302 = vpow.pop %v301
        %v303 = vmul.f32 %v291, 1.442695
        %v304 = vpow.pop %v303
        %v305 = vmul.f32 %v292, 1.442695
        %v306 = vpow.pop %v305
        %v307 = vmul.f32 %v293, 1.442695
        %v308 = vpow.pop %v307
        %v309 = vmul.f32 %v294, 1.442695
        %v310 = vpow.pop %v309
        %v311 = vadd.f32 %v296, 1.0
        %v312 = vlog2.pop %v311
        %v313 = vmul.f32 %v312, 0.6931472
        %v314 = vmul.f32 -0.5, %v296
        %v315 = vadd.f32 %v314, 1.0
        %v316 = vmul.f32 %v315, %v296
        %v317 = vand.u32 2147483647, %v296
        %vm318 = vcmp.lt.f32.partialorder %v317, 0.0004427343
        %v319 = vsel %vm318, %v316, %v313
        %v320 = vadd.f32 %v298, 1.0
        %v321 = vlog2.pop %v320
        %v322 = vmul.f32 %v321, 0.6931472
        %v323 = vmul.f32 -0.5, %v298
        %v324 = vadd.f32 %v323, 1.0
        %v325 = vmul.f32 %v324, %v298
        %v326 = vand.u32 2147483647, %v298
        %vm327 = vcmp.lt.f32.partialorder %v326, 0.0004427343
        %v328 = vsel %vm327, %v325, %v322
        %v329 = vadd.f32 %v300, 1.0
        %v330 = vlog2.pop %v329
        %v331 = vmul.f32 %v330, 0.6931472
        %v332 = vmul.f32 -0.5, %v300
        %v333 = vadd.f32 %v332, 1.0
        %v334 = vmul.f32 %v333, %v300
        %v335 = vand.u32 2147483647, %v300
        %vm336 = vcmp.lt.f32.partialorder %v335, 0.0004427343
        %v337 = vsel %vm336, %v334, %v331
        %v338 = vadd.f32 %v302, 1.0
        %v339 = vlog2.pop %v338
        %v340 = vmul.f32 %v339, 0.6931472
        %v341 = vmul.f32 -0.5, %v302
        %v342 = vadd.f32 %v341, 1.0
        %v343 = vmul.f32 %v342, %v302
        %v344 = vand.u32 2147483647, %v302
        %vm345 = vcmp.lt.f32.partialorder %v344, 0.0004427343
        %v346 = vsel %vm345, %v343, %v340
        %v347 = vadd.f32 %v304, 1.0
        %v348 = vlog2.pop %v347
        %v349 = vmul.f32 %v348, 0.6931472
        %v350 = vmul.f32 -0.5, %v304
        %v351 = vadd.f32 %v350, 1.0
        %v352 = vmul.f32 %v351, %v304
        %v353 = vand.u32 2147483647, %v304
        %vm354 = vcmp.lt.f32.partialorder %v353, 0.0004427343
        %v355 = vsel %vm354, %v352, %v349
        %v356 = vadd.f32 %v306, 1.0
        %v357 = vlog2.pop %v356
        %v358 = vmul.f32 %v357, 0.6931472
        %v359 = vmul.f32 -0.5, %v306
        %v360 = vadd.f32 %v359, 1.0
        %v361 = vmul.f32 %v360, %v306
        %v362 = vand.u32 2147483647, %v306
        %vm363 = vcmp.lt.f32.partialorder %v362, 0.0004427343
        %v364 = vsel %vm363, %v361, %v358
        %v365 = vadd.f32 %v308, 1.0
        %v366 = vlog2.pop %v365
        %v367 = vmul.f32 %v366, 0.6931472
        %v368 = vmul.f32 -0.5, %v308
        %v369 = vadd.f32 %v368, 1.0
        %v370 = vmul.f32 %v369, %v308
        %v371 = vand.u32 2147483647, %v308
        %vm372 = vcmp.lt.f32.partialorder %v371, 0.0004427343
        %v373 = vsel %vm372, %v370, %v367
        %v374 = vadd.f32 %v310, 1.0
        %v375 = vlog2.pop %v374
        %v376 = vmul.f32 %v375, 0.6931472
        %v377 = vmul.f32 -0.5, %v310
        %v378 = vadd.f32 %v377, 1.0
        %v379 = vmul.f32 %v378, %v310
        %v380 = vand.u32 2147483647, %v310
        %vm381 = vcmp.lt.f32.partialorder %v380, 0.0004427343
        %v382 = vsel %vm381, %v379, %v376
        %v383 = vsub.f32 0.0, %v271
        %v384 = vsub.f32 0.0, %v272
        %v385 = vsub.f32 0.0, %v273
        %v386 = vsub.f32 0.0, %v274
        %v387 = vsub.f32 0.0, %v275
        %v388 = vsub.f32 0.0, %v276
        %v389 = vsub.f32 0.0, %v277
        %v390 = vsub.f32 0.0, %v278
        %v391 = vmax.f32 %v383, 0.0
        %v392 = vmax.f32 %v384, 0.0
        %v393 = vmax.f32 %v385, 0.0
        %v394 = vmax.f32 %v386, 0.0
        %v395 = vmax.f32 %v387, 0.0
        %v396 = vmax.f32 %v388, 0.0
        %v397 = vmax.f32 %v389, 0.0
        %v398 = vmax.f32 %v390, 0.0
        %v399 = vadd.f32 %v391, %v319
        %v400 = vadd.f32 %v392, %v328
        %v401 = vadd.f32 %v393, %v337
        %v402 = vadd.f32 %v394, %v346
        %v403 = vadd.f32 %v395, %v355
        %v404 = vadd.f32 %v396, %v364
        %v405 = vadd.f32 %v397, %v373
        %v406 = vadd.f32 %v398, %v382
        %v407 = vld [vmem:[%s233] sm:$0xff]
        %v408 = vld [vmem:[%s233 + $0x8] sm:$0xff]
        %v409 = vmul.f32 %v399, %v407
        %v410 = vmul.f32 %v400, %v408
        %v411 = vmul.f32 %v401, %v407
        %v412 = vmul.f32 %v402, %v408
        %v413 = vmul.f32 %v403, %v407
        %v414 = vmul.f32 %v404, %v408
        %v415 = vmul.f32 %v405, %v407
        %v416 = vmul.f32 %v406, %v408
        // Predicated region
        $region41: #{tpu_custom_call.1} parent=27 // pred_check
          %p417 = pneg %p262
        $region42: #{tpu_custom_call.1} parent=27 // pred_check_branch
          %419 = sbr.rel (%p417) target = $region44
        $region43: #{tpu_custom_call.1} parent=27 // pred_region
          %v420 = vlaneseq
          %v421 = vshrl.u32 %v420, 7
          %v422 = vadd.s32 %v421, 8
          %s423 = smul.u32 %s26, 16
          %v424 = vstv %s423
          %v425 = vadd.s32 %v424, %v421
          %v426 = vadd.s32 %v424, %v422
          %vm427 = vcmp.lt.s32.totalorder %v425, 2
          %vm428 = vcmp.lt.s32.totalorder %v426, 2
          %v429 = vsel %vm427, %v409, 0.0
          %v430 = vsel %vm428, %v410, 0.0
          %v431 = vsel %vm427, %v411, 0.0
          %v432 = vsel %vm428, %v412, 0.0
          %v433 = vsel %vm427, %v413, 0.0
          %v434 = vsel %vm428, %v414, 0.0
          %v435 = vsel %vm427, %v415, 0.0
          %v436 = vsel %vm428, %v416, 0.0
          %v437 = vadd.f32 %v429, %v431
          %v438 = vadd.f32 %v437, %v433
          %v439 = vadd.f32 %v438, %v435
          %v440 = vadd.f32 %v430, %v432
          %v441 = vadd.f32 %v440, %v434
          %v442 = vadd.f32 %v441, %v436
          %v443 = vld [vmem:[#allocation7] sm:$0xff]
          %v444 = vadd.f32 %v439, %v442
          %v445 = vadd.f32 %v443, %v444
          %446 = vst [vmem:[#allocation7] sm:$0xff] %v445
        $region44: #{tpu_custom_call.1} parent=27 // pred_fallthru
          _
        // Predicated region
        $region45: #{tpu_custom_call.1} parent=27 // pred_check
          %p447 = pneg %p110
        $region46: #{tpu_custom_call.1} parent=27 // pred_check_branch
          %449 = sbr.rel (%p447) target = $region48
        $region47: #{tpu_custom_call.1} parent=27 // pred_region
          %s451 = ssub.s32 128, 128
          %452 = vsyncadd [#allocation4], %s451
          %s454 = sshll.u32 [#allocation7], 4
          %s455 = int_to_ptr.vmem [resolvable:$true] %s454
          %457 = dma.vmem_to_hbm [thread:$0]  %s455, 128, %s2, [#allocation4]
        $region48: #{tpu_custom_call.1} parent=27 // pred_fallthru
          _
        // Predicated region
        $region49: #{tpu_custom_call.1} parent=27 // pred_check
          %p458 = pneg %p110
        $region50: #{tpu_custom_call.1} parent=27 // pred_check_branch
          %460 = sbr.rel (%p458) target = $region52
        $region51: #{tpu_custom_call.1} parent=27 // pred_region
          %461 = dma.done [#allocation4], 128
        $region52: #{tpu_custom_call.1} parent=27 // pred_fallthru
          _
      $region28: #{tpu_custom_call.1} parent=5 // pred_fallthru
        _
      %p462 = scmp.le.s32.totalorder 2, %s15
      // Predicated region
      $region53: #{tpu_custom_call.1} parent=5 // pred_check
        %p463 = pneg %p462
      $region54: #{tpu_custom_call.1} parent=5 // pred_check_branch
        %465 = sbr.rel (%p463) target = $region56
      $region55: #{tpu_custom_call.1} parent=5 // pred_region
        %s466 = ssub.s32 %s15, 2
      $region56: #{tpu_custom_call.1} parent=5 // pred_fallthru
        _
    $region6: #{tpu_custom_call.1} parent=1 // loop_footer
      %s19 = sadd.s32 1, %s15
    $region7: #{tpu_custom_call.1} parent=1 // loop_footer_branch
      %14 = sbr.rel target = $region3
    $region8: #{tpu_custom_call.1} parent=1 // loop_exit
      _
    %467 = vsyncpa [#allocation3], 1
    %s468 = scalar_lea.sflag [#allocation3], 1
    %469 = vsyncpa %s468, 1
    %470 = vsyncpa [#allocation6], 1
    %s471 = scalar_lea.sflag [#allocation6], 1
    %472 = vsyncpa %s471, 1
    %473 = vsyncpa [#allocation4], 1
    %s474 = scalar_lea.sflag [#allocation4], 1
    %475 = vsyncpa %s474, 1

</llo_original>
